<compile_context>
chip_gen: v7x
topology: tpu7x:2x2x1
jax: 0.10.0
libtpu: 0.0.40
codegen_flags: <defaults>
</compile_context>

<pallas_src>
import jax
import jax.numpy as jnp
from jax.experimental import pallas as pl
from jax.experimental.pallas import tpu as pltpu


def _round_up(x, m):
    return ((x + m - 1) // m) * m


def _tpu_vmem_capacity_bytes():
    """Per-core VMEM capacity; conservative 64 MiB (v7x per-TC) if unknown."""
    try:
        cap = int(pltpu.get_tpu_info().vmem_capacity_bytes)
        return max(16 << 20, min(cap, 128 << 20))
    except Exception:
        return 64 << 20


def _make_kernel(tn, n_col_tiles, compute_dtype, use_scratch):
    """Fused kernel: o = x + (x @ W^T + b) for one (tm, tn) output tile."""

    def kernel(x_ref, w_ref, b_ref, o_ref, *scratch):
        # x_ref: (TM, H)  activations, full contraction dim, original dtype
        # w_ref: (H, TN)  weight in (in, out) layout, compute dtype
        # b_ref: (1, TN)  bias, f32
        # o_ref: (TM, TN) output tile
        if use_scratch:
            # Cast the (TM, H) LHS slab to the MXU compute dtype ONCE per row
            # tile (j == 0), not once per column tile.
            xc_ref = scratch[0]

            @pl.when(pl.program_id(1) == 0)
            def _cast_once():
                xc_ref[...] = x_ref[...].astype(compute_dtype)

            lhs = xc_ref[...]
        else:
            lhs = x_ref[...]
            if lhs.dtype != jnp.dtype(compute_dtype):
                lhs = lhs.astype(compute_dtype)

        # MXU matmul with f32 accumulation; weight arrives pre-transposed.
        y = jnp.dot(lhs, w_ref[...], preferred_element_type=jnp.float32)
        # Bias + residual adds stay in f32 on the VPU.
        y = y + b_ref[...].astype(jnp.float32)

        if n_col_tiles == 1:
            x_res = x_ref[...]
        else:
            col = pl.multiple_of(pl.program_id(1) * tn, tn)
            x_res = x_ref[:, pl.ds(col, tn)]

        o_ref[...] = (x_res.astype(jnp.float32) + y).astype(o_ref.dtype)

    return kernel


def _select_tiles(M, H, xb, ob, cb, needs_cast, budget, max_tn):
    """Pick (tm, tn, vmem_need_bytes) under the per-core VMEM budget.

    Prefers a fully resident, single-buffered weight (tn = H); otherwise
    streams (H, tn) column slabs with tn a multiple of 128 dividing H.
    """
    # Sublane alignment for the narrowest dtype that lives in VMEM tiles.
    sublane_align = {4: 8, 2: 16, 1: 32}.get(min(xb, cb), 8)
    m_cap = _round_up(M, sublane_align)

    cand = [1024, 768, 512, 384, 256, 128, 64, 32, 16, 8]
    cand = [min(c, m_cap) for c in cand if c % sublane_align == 0]
    tms, seen = [], set()
    for c in cand:
        if c not in seen:
            seen.add(c)
            tms.append(c)
    if not tms:
        tms = [m_cap]

    # 1) Fully resident weight (tn = H), W + bias single-buffered.
    if max_tn is None or max_tn >= H:
        for tm in tms:
            need = (H * H * cb            # W (Buffered(1))
                    + H * 4               # bias (Buffered(1))
                    + 2 * tm * H * xb     # x row slabs (double-buffered)
                    + 2 * tm * H * ob)    # out tiles (double-buffered)
            if need <= budget:
                return tm, H, need

    # 2) Stream W in (H, tn) column slabs.  Prefer tn >= 256 (full MXU output
    #    width), then the largest tm (arithmetic intensity ~ tm).
    if H % 128 == 0:
        tns = [t for t in range(H - 128, 0, -128) if H % t == 0]
        if max_tn is not None:
            tns = [t for t in tns if t <= max_tn]
        best = None
        for tm in tms:
            for tn in tns:
                need = (2 * H * tn * cb                     # W slabs
                        + tn * 4                            # bias
                        + 2 * tm * H * xb                   # x row slabs
                        + 2 * tm * tn * ob                  # out tiles
                        + (tm * H * cb if needs_cast else 0))  # LHS scratch
                if need <= budget:
                    key = (1 if tn >= 256 else 0, tm, tn)
                    if best is None or key > best[0]:
                        best = (key, tm, tn, need)
        if best is not None:
            return best[1], best[2], best[3]

    # 3) Fallback: smallest row tile, full-width resident W; the caller raises
    #    vmem_limit_bytes to cover `need` (may still be tight for huge H).
    tm = tms[-1]
    need = H * H * cb + H * 4 + 2 * tm * H * xb + 2 * tm * H * ob
    return tm, H, need


def residual_forward(x, w, b, *, compute_dtype=None, max_tn=None,
                     vmem_budget_bytes=None):
    """x: (B, S, H); w: (H, H) PyTorch (out, in) layout; b: (H,).

    Returns x + (x @ w.T + b) via a single fused Pallas kernel.
    compute_dtype defaults to bf16 MXU inputs when x is f32 (f32 accumulate,
    f32 bias/residual adds).  Pass compute_dtype=jnp.float32 for exact f32.
    """
    x = jnp.asarray(x)
    w = jnp.asarray(w)
    b = jnp.asarray(b)
    B, S, H = x.shape
    M = B * S

    if compute_dtype is None:
        compute_dtype = jnp.bfloat16 if x.dtype == jnp.float32 else x.dtype
    compute_dtype = jnp.dtype(compute_dtype)

    xb = jnp.dtype(x.dtype).itemsize
    ob = xb
    cb = compute_dtype.itemsize
    needs_cast = jnp.dtype(x.dtype) != compute_dtype

    vmem_cap = _tpu_vmem_capacity_bytes()
    budget = (int(vmem_budget_bytes) if vmem_budget_bytes is not None
              else int(0.85 * vmem_cap))

    tm, tn, need = _select_tiles(M, H, xb, ob, cb, needs_cast, budget, max_tn)
    n_n = H // tn
    M_pad = _round_up(M, tm)
    n_m = M_pad // tm

    x2d = x.reshape(M, H)
    if M_pad != M:
        # Pad rows (zeros) so every row tile is full -> pipelined, no giant
        # fallback block.  Padded rows compute x(=0) + b and are sliced away.
        x2d = jnp.pad(x2d, ((0, M_pad - M), (0, 0)))

    # Cast-then-transpose: half the transpose bytes when downcasting to bf16.
    w_t = w.astype(compute_dtype).T
    b2d = b.reshape(1, H).astype(jnp.float32)

    use_scratch = (n_n > 1) and needs_cast
    kernel = _make_kernel(tn, n_n, compute_dtype, use_scratch)
    scratch_shapes = ([pltpu.VMEM((tm, H), compute_dtype)]
                      if use_scratch else [])

    # Cost estimate: count re-streamed weight bytes when W is column-tiled.
    w_streams = n_m if n_n > 1 else 1
    cost = pl.CostEstimate(
        flops=2 * M_pad * H * H,
        transcendentals=0,
        bytes_accessed=(M_pad * H * xb + w_streams * H * H * cb
                        + H * 4 + M_pad * H * ob),
    )

    def build_call(use_buffered):
        # Single-buffer W + bias when their block index is loop-invariant:
        # halves the resident-W VMEM cost (matters on v7x's 64 MiB per TC).
        if n_n == 1:
            if use_buffered:
                w_spec = pl.BlockSpec((H, H), lambda i, j: (0, 0),
                                      pipeline_mode=pl.Buffered(1))
            else:
                w_spec = pl.BlockSpec((H, H), lambda i, j: (0, 0))
        else:
            w_spec = pl.BlockSpec((H, tn), lambda i, j: (0, j))

        if use_buffered:
            b_spec = pl.BlockSpec((1, tn), lambda i, j: (0, j),
                                  pipeline_mode=pl.Buffered(1))
        else:
            b_spec = pl.BlockSpec((1, tn), lambda i, j: (0, j))

        extra = 0
        if not use_buffered:
            extra = (H * H * cb if n_n == 1 else 0) + tn * 4
        vmem_limit = int(min(max(need + extra + (2 << 20), 16 << 20),
                             int(0.92 * vmem_cap)))
        vmem_limit = max(vmem_limit, need + extra + (1 << 20))

        grid_spec = pltpu.PrefetchScalarGridSpec(
            num_scalar_prefetch=0,
            grid=(n_m, n_n),
            in_specs=[
                # x: one (tm, H) row slab per i; block index invariant over j
                # so it is DMA'd once per row tile.
                pl.BlockSpec((tm, H), lambda i, j: (i, 0)),
                w_spec,
                b_spec,
            ],
            out_specs=pl.BlockSpec((tm, tn), lambda i, j: (i, j)),
            scratch_shapes=scratch_shapes,
        )
        return pl.pallas_call(
            kernel,
            out_shape=jax.ShapeDtypeStruct((M_pad, H), x.dtype),
            grid_spec=grid_spec,
            compiler_params=pltpu.CompilerParams(
                # No reduction grid axis (K fully inside the tile).  The j axis
                # must stay sequential when the LHS-cast scratch is carried
                # across it; otherwise both axes can shard across v7x's 2 TCs.
                dimension_semantics=(
                    "parallel", "arbitrary" if use_scratch else "parallel"),
                vmem_limit_bytes=vmem_limit,
            ),
            cost_estimate=cost,
        )(x2d, w_t, b2d)

    try:
        out2d = build_call(use_buffered=True)
    except Exception:
        # Robustness fallback if this JAX build rejects Buffered(1).
        out2d = build_call(use_buffered=False)

    if M_pad != M:
        out2d = out2d[:M]
    return out2d.reshape(B, S, H)

    # TODO(synk): when W must be streamed, swapping the grid order to
    # re-stream x instead of W (compare n_m*H^2*cb vs n_n*M*H*xb) can further
    # cut HBM traffic for short sequences; not implemented here.


def reference_forward(x, w, b):
    # Pure-JAX reference of Residual(Linear): x + (x @ W^T + b)
    return x + (jnp.einsum("bsh,oh->bso", x, w) + b)


if __name__ == "__main__":
    key = jax.random.PRNGKey(0)
    kx, kw, kb = jax.random.split(key, 3)

    # Small shapes consistent with the module: batch=2, seq=8, hidden=32.
    B, S, H = 2, 8, 32
    x = jax.random.normal(kx, (B, S, H), dtype=jnp.float32)
    # Deterministic "Linear(hidden, hidden)" parameters, PyTorch (out, in) layout.
    w = jax.random.normal(kw, (H, H), dtype=jnp.float32) * 0.02
    b = jax.random.normal(kb, (H,), dtype=jnp.float32) * 0.02

    ref = reference_forward(x, w, b)

    # Default path: bf16 MXU inputs, f32 accumulate + f32 bias/residual adds.
    out = jax.block_until_ready(residual_forward(x, w, b))
    assert out.shape == (B, S, H)
    assert jnp.allclose(out, ref, atol=2e-2, rtol=2e-2), "bf16 path mismatch"

    # Exact-f32 MXU path: tight tolerance against the reference.
    out_f32 = jax.block_until_ready(
        residual_forward(x, w, b, compute_dtype=jnp.float32))
    assert jnp.allclose(out_f32, ref, atol=1e-5, rtol=1e-5), "f32 path mismatch"

    # Exercise the streamed-weight path: column tiling (tn < H), per-row-tile
    # LHS cast into VMEM scratch, and odd M handled via row padding.
    B2, S2, H2 = 3, 7, 256  # M = 21 (odd -> padded), H2 a multiple of 128
    k2x, k2w, k2b = jax.random.split(jax.random.PRNGKey(1), 3)
    x2 = jax.random.normal(k2x, (B2, S2, H2), dtype=jnp.float32)
    w2 = jax.random.normal(k2w, (H2, H2), dtype=jnp.float32) * 0.02
    b2 = jax.random.normal(k2b, (H2,), dtype=jnp.float32) * 0.02
    out2 = jax.block_until_ready(residual_forward(x2, w2, b2, max_tn=128))
    ref2 = reference_forward(x2, w2, b2)
    assert out2.shape == (B2, S2, H2)
    assert jnp.allclose(out2, ref2, atol=2e-2, rtol=2e-2), "streamed path mismatch"

    # TODO(synk): Residual is a generic wrapper; the fused branch here is the
    # Linear case. Arbitrary inner modules would need their own fused kernels.

    print("KERNEL_OK")
</pallas_src>

<mosaic_0001>
module attributes {stable_mosaic.version = 11 : i64} {
  func.func @kernel(%arg0: i32, %arg1: i32, %arg2: memref<16x32xf32, #tpu.memory_space<vmem>>, %arg3: memref<32x32xbf16, #tpu.memory_space<vmem>>, %arg4: memref<1x32xf32, #tpu.memory_space<vmem>>, %arg5: memref<16x32xf32, #tpu.memory_space<vmem>>) attributes {dimension_semantics = [#tpu.dimension_semantics<parallel>, #tpu.dimension_semantics<parallel>], iteration_bounds = array<i64: 1, 1>, scalar_prefetch = 0 : i64, scratch_operands = 0 : i64, tpu.core_type = #tpu.core_type<tc>, window_params = [{transform_indices = @transform_0, window_bounds = array<i64: 16, 32>}, {pipeline_mode = #tpu.pipeline_mode<synchronous>, transform_indices = @transform_1, window_bounds = array<i64: 32, 32>}, {pipeline_mode = #tpu.pipeline_mode<synchronous>, transform_indices = @transform_2, window_bounds = array<i64: 1, 32>}, {transform_indices = @transform_3, window_bounds = array<i64: 16, 32>}]} {
    %c0 = arith.constant 0 : index
    %c0_0 = arith.constant 0 : index
    %0 = vector.load %arg2[%c0, %c0_0] : memref<16x32xf32, #tpu.memory_space<vmem>>, vector<16x32xf32>
    %1 = arith.truncf %0 : vector<16x32xf32> to vector<16x32xbf16>
    %c0_1 = arith.constant 0 : index
    %c0_2 = arith.constant 0 : index
    %2 = vector.load %arg3[%c0_1, %c0_2] : memref<32x32xbf16, #tpu.memory_space<vmem>>, vector<32x32xbf16>
    %cst = arith.constant dense<0.000000e+00> : vector<16x32xf32>
    %3 = tpu.matmul %1, %2, %cst {dimension_numbers = #tpu.dot_dimension_numbers<[1], [0], [0], [1], [0, 0, 1, 1], [], []>} : vector<16x32xbf16>, vector<32x32xbf16>, vector<16x32xf32> -> vector<16x32xf32>
    %c0_3 = arith.constant 0 : index
    %c0_4 = arith.constant 0 : index
    %4 = vector.load %arg4[%c0_3, %c0_4] : memref<1x32xf32, #tpu.memory_space<vmem>>, vector<1x32xf32>
    %5 = vector.broadcast %4 : vector<1x32xf32> to vector<16x32xf32>
    %6 = arith.addf %3, %5 : vector<16x32xf32>
    %c0_5 = arith.constant 0 : index
    %c0_6 = arith.constant 0 : index
    %7 = vector.load %arg2[%c0_5, %c0_6] : memref<16x32xf32, #tpu.memory_space<vmem>>, vector<16x32xf32>
    %8 = arith.addf %7, %6 : vector<16x32xf32>
    %c0_7 = arith.constant 0 : index
    %c0_8 = arith.constant 0 : index
    %9 = vector.load %arg5[%c0_7, %c0_8] : memref<16x32xf32, #tpu.memory_space<vmem>>, vector<16x32xf32>
    tpu.vector_store %arg5[%c0_7, %c0_8], %8 {strides = array<i32>} : memref<16x32xf32, #tpu.memory_space<vmem>>, vector<16x32xf32>,
    return
  }
  func.func @transform_0(%arg0: i32, %arg1: i32) -> (i32, i32) {
    %c0_i32 = arith.constant 0 : i32
    %c0_i32_0 = arith.constant 0 : i32
    return %arg0, %c0_i32 : i32, i32
  }
  func.func @transform_1(%arg0: i32, %arg1: i32) -> (i32, i32) {
    %c0_i32 = arith.constant 0 : i32
    %c0_i32_0 = arith.constant 0 : i32
    %c0_i32_1 = arith.constant 0 : i32
    return %c0_i32, %c0_i32_0 : i32, i32
  }
  func.func @transform_2(%arg0: i32, %arg1: i32) -> (i32, i32) {
    %c0_i32 = arith.constant 0 : i32
    %c0_i32_0 = arith.constant 0 : i32
    return %c0_i32, %arg1 : i32, i32
  }
  func.func @transform_3(%arg0: i32, %arg1: i32) -> (i32, i32) {
    %c0_i32 = arith.constant 0 : i32
    return %arg0, %arg1 : i32, i32
  }
}

module attributes {stable_mosaic.version = 11 : i64} {
  func.func @kernel(%arg0: i32, %arg1: i32, %arg2: memref<16x32xf32, #tpu.memory_space<vmem>>, %arg3: memref<32x32xbf16, #tpu.memory_space<vmem>>, %arg4: memref<1x32xf32, #tpu.memory_space<vmem>>, %arg5: memref<16x32xf32, #tpu.memory_space<vmem>>) attributes {dimension_semantics = [#tpu.dimension_semantics<parallel>, #tpu.dimension_semantics<parallel>], iteration_bounds = array<i64: 1, 1>, scalar_prefetch = 0 : i64, scratch_operands = 0 : i64, tpu.core_type = #tpu.core_type<tc>, window_params = [{transform_indices = @transform_0, window_bounds = array<i64: 16, 32>}, {pipeline_mode = #tpu.pipeline_mode<synchronous>, transform_indices = @transform_1, window_bounds = array<i64: 32, 32>}, {transform_indices = @transform_2, window_bounds = array<i64: 1, 32>}, {transform_indices = @transform_3, window_bounds = array<i64: 16, 32>}]} {
    %c0 = arith.constant 0 : index
    %c0_0 = arith.constant 0 : index
    %0 = vector.load %arg2[%c0, %c0_0] : memref<16x32xf32, #tpu.memory_space<vmem>>, vector<16x32xf32>
    %1 = arith.truncf %0 : vector<16x32xf32> to vector<16x32xbf16>
    %c0_1 = arith.constant 0 : index
    %c0_2 = arith.constant 0 : index
    %2 = vector.load %arg3[%c0_1, %c0_2] : memref<32x32xbf16, #tpu.memory_space<vmem>>, vector<32x32xbf16>
    %cst = arith.constant dense<0.000000e+00> : vector<16x32xf32>
    %3 = tpu.matmul %1, %2, %cst {dimension_numbers = #tpu.dot_dimension_numbers<[1], [0], [0], [1], [0, 0, 1, 1], [], []>} : vector<16x32xbf16>, vector<32x32xbf16>, vector<16x32xf32> -> vector<16x32xf32>
    %c0_3 = arith.constant 0 : index
    %c0_4 = arith.constant 0 : index
    %4 = vector.load %arg4[%c0_3, %c0_4] : memref<1x32xf32, #tpu.memory_space<vmem>>, vector<1x32xf32>
    %5 = vector.broadcast %4 : vector<1x32xf32> to vector<16x32xf32>
    %6 = arith.addf %3, %5 : vector<16x32xf32>
    %c0_5 = arith.constant 0 : index
    %c0_6 = arith.constant 0 : index
    %7 = vector.load %arg2[%c0_5, %c0_6] : memref<16x32xf32, #tpu.memory_space<vmem>>, vector<16x32xf32>
    %8 = arith.addf %7, %6 : vector<16x32xf32>
    %c0_7 = arith.constant 0 : index
    %c0_8 = arith.constant 0 : index
    %9 = vector.load %arg5[%c0_7, %c0_8] : memref<16x32xf32, #tpu.memory_space<vmem>>, vector<16x32xf32>
    tpu.vector_store %arg5[%c0_7, %c0_8], %8 {strides = array<i32>} : memref<16x32xf32, #tpu.memory_space<vmem>>, vector<16x32xf32>,
    return
  }
  func.func @transform_0(%arg0: i32, %arg1: i32) -> (i32, i32) {
    %c0_i32 = arith.constant 0 : i32
    %c0_i32_0 = arith.constant 0 : i32
    return %arg0, %c0_i32 : i32, i32
  }
  func.func @transform_1(%arg0: i32, %arg1: i32) -> (i32, i32) {
    %c0_i32 = arith.constant 0 : i32
    %c0_i32_0 = arith.constant 0 : i32
    %c0_i32_1 = arith.constant 0 : i32
    return %c0_i32, %c0_i32_0 : i32, i32
  }
  func.func @transform_2(%arg0: i32, %arg1: i32) -> (i32, i32) {
    %c0_i32 = arith.constant 0 : i32
    %c0_i32_0 = arith.constant 0 : i32
    return %c0_i32, %arg1 : i32, i32
  }
  func.func @transform_3(%arg0: i32, %arg1: i32) -> (i32, i32) {
    %c0_i32 = arith.constant 0 : i32
    return %arg0, %arg1 : i32, i32
  }
}

</mosaic_0001>

<llo_original>
// kernel: tpu_custom_call.1
$region0: #{tpu_custom_call.1}
  #allocation0 [shape = 'u32[]', space=smem, size = 0x4, offset = 0x4, fixed_abs, tag = 'smem constant byte address 0x4 - core index']
  #allocation1 [shape = 'u32[144,128]{1,0:T(1,128)}', space=vmem, size = 0x12000, scoped, tag = 'internal scratch']
  %s0 = inlined_call_operand.hbm [shape: f32[16,32], index: 0, kind: input, shape index: {}]
  %s1 = inlined_call_operand.hbm [shape: bf16[32,32], index: 1, kind: input, shape index: {}]
  %s2 = inlined_call_operand.vmem [shape: f32[1,32], index: 2, kind: input, shape index: {}]
  %s3 = inlined_call_operand.hbm [shape: f32[16,32], index: 3, kind: output, shape index: {}]
  %s4 = sld [smem:[#allocation0]]
  $region30: #{tpu_custom_call.1} parent=0
    _
  %s6 = ssub.s32 1, %s4
  %s7 = scalar_select 0, %s6, %s4
  $region1: #{tpu_custom_call.1} parent=0
    #allocation2 [shape = 'u8[8192]{0}', space=vmem, size = 0x2000, scoped, tag = 'input window, operand 0, single buffered']
    #allocation3 [shape = 's32[1]{0}', space=sflag, size = 0x4, scoped, tag = 'scoped memory for tpu_custom_call.1']
    #allocation4 [shape = 's32[1]{0}', space=sflag, size = 0x4, scoped, tag = 'scoped memory for tpu_custom_call.1']
    #allocation5 [shape = 'u8[8192]{0}', space=vmem, size = 0x2000, scoped, tag = 'input window, operand 1, single buffered']
    #allocation6 [shape = 's32[1]{0}', space=sflag, size = 0x4, scoped, tag = 'scoped memory for tpu_custom_call.1']
    #allocation7 [shape = 'u8[8192]{0}', space=vmem, size = 0x2000, scoped, tag = 'output window, operand 0, single buffered']
    %8 = vsyncpa [#allocation3], 0
    %9 = vsyncpa [#allocation6], 0
    %10 = vsyncpa [#allocation4], 0
    // Predicated region
    $region2: #{tpu_custom_call.1} parent=1 // pred_check
      _
    $region3: #{tpu_custom_call.1} parent=1 // pred_check_branch
      %12 = sbr.rel (0) target = $region5
    $region4: #{tpu_custom_call.1} parent=1 // pred_region
      %s14 = ssub.s32 256, 256
      %15 = vsyncadd [#allocation3], %s14
      %s16 = sshll.u32 [#allocation2], 4
      %s17 = int_to_ptr.vmem [resolvable:$true] %s16
      %22 = dma.hbm_to_vmem [thread:$0]  %s0, 256, %s17, [#allocation3], 128, 128, 8
    $region5: #{tpu_custom_call.1} parent=1 // pred_fallthru
      _
    // Predicated region
    $region6: #{tpu_custom_call.1} parent=1 // pred_check
      _
    $region7: #{tpu_custom_call.1} parent=1 // pred_check_branch
      %24 = sbr.rel (0) target = $region9
    $region8: #{tpu_custom_call.1} parent=1 // pred_region
      %s26 = ssub.s32 256, 256
      %27 = vsyncadd [#allocation6], %s26
      %s28 = sshll.u32 [#allocation5], 4
      %s29 = int_to_ptr.vmem [resolvable:$true] %s28
      %34 = dma.hbm_to_vmem [thread:$0]  %s1, 256, %s29, [#allocation6], 64, 64, 4
    $region9: #{tpu_custom_call.1} parent=1 // pred_fallthru
      _
    // Predicated region
    $region10: #{tpu_custom_call.1} parent=1 // pred_check
      _
    $region11: #{tpu_custom_call.1} parent=1 // pred_check_branch
      %36 = sbr.rel (0) target = $region13
    $region12: #{tpu_custom_call.1} parent=1 // pred_region
      _
    $region13: #{tpu_custom_call.1} parent=1 // pred_fallthru
      _
    // Predicated region
    $region14: #{tpu_custom_call.1} parent=1 // pred_check
      _
    $region15: #{tpu_custom_call.1} parent=1 // pred_check_branch
      %38 = sbr.rel (0) target = $region17
    $region16: #{tpu_custom_call.1} parent=1 // pred_region
      %39 = dma.done [#allocation3], 256
    $region17: #{tpu_custom_call.1} parent=1 // pred_fallthru
      _
    // Predicated region
    $region18: #{tpu_custom_call.1} parent=1 // pred_check
      _
    $region19: #{tpu_custom_call.1} parent=1 // pred_check_branch
      %41 = sbr.rel (0) target = $region21
    $region20: #{tpu_custom_call.1} parent=1 // pred_region
      %42 = dma.done [#allocation6], 256
    $region21: #{tpu_custom_call.1} parent=1 // pred_fallthru
      _
    %v44 = vld [vmem:[#allocation2] sm:$0xff]
    %v45 = vld [vmem:[#allocation2 + $0x8] sm:$0xff]
    %v46 = vpack.c.bf16 %v45, %v44
    %v47 = vld [vmem:[#allocation5] sm:$0xf]
    %v48 = vld [vmem:[#allocation5 + $0x4] sm:$0xf]
    %v49 = vld [vmem:[#allocation5 + $0x8] sm:$0xf]
    %v50 = vld [vmem:[#allocation5 + $0xc] sm:$0xf]
    %v51 = vld [vmem:[%s2] sm:$0x1]
    %v53 = vlaneseq
    %v54 = vshrl.u32 %v53, 7
    %v55 = vsub.s32 0, %v54
    %v56 = vrot.slane %v51, %v55
    %v62 = vunpack.c.l.b16 %v47
    %v63 = vunpack.c.l.b16 %v48
    %v64 = vunpack.c.l.b16 %v49
    %v65 = vunpack.c.l.b16 %v50
    %v66 = vpack.c.b16 %v63, %v62
    %v67 = vpack.c.b16 %v65, %v64
    %vm70 = vcmask 261120
    %v72 = vsel %vm70, %v46, 0
    %74 = vmatprep.subr.bf16.mxu0 0
    %75 = vmatpush1.bf16.msra.mxu0 %v66
    %76 = vmatprep.subr.bf16.mxu0 0
    %77 = vmatpush1.bf16.msra.mxu0 %v67
    %78 = vmatprep.subr.bf16.mxu0 0
    %79 = vmatpush1.bf16.msra.mxu0 0
    %80 = vmatprep.subr.bf16.mxu0 0
    %81 = vmatpush1.bf16.msra.mxu0 0
    %82 = vmatprep.subr.bf16.mxu0 0
    %83 = vmatpush1.bf16.msra.mxu0 0
    %84 = vmatprep.subr.bf16.mxu0 0
    %85 = vmatpush1.bf16.msra.mxu0 0
    %86 = vmatprep.subr.bf16.mxu0 0
    %87 = vmatpush1.bf16.msra.mxu0 0
    %88 = vmatprep.subr.bf16.mxu0 0
    %89 = vmatpush1.bf16.msra.mxu0 0
    %90 = vmatprep.subr.bf16.mxu0 0
    %91 = vmatpush1.bf16.msra.mxu0 0
    %92 = vmatprep.subr.bf16.mxu0 0
    %93 = vmatpush1.bf16.msra.mxu0 0
    %94 = vmatprep.subr.bf16.mxu0 0
    %95 = vmatpush1.bf16.msra.mxu0 0
    %96 = vmatprep.subr.bf16.mxu0 0
    %97 = vmatpush1.bf16.msra.mxu0 0
    %98 = vmatprep.subr.bf16.mxu0 0
    %99 = vmatpush1.bf16.msra.mxu0 0
    %100 = vmatprep.subr.bf16.mxu0 0
    %101 = vmatpush1.bf16.msra.mxu0 0
    %102 = vmatprep.subr.bf16.mxu0 0
    %103 = vmatpush1.bf16.msra.mxu0 0
    %104 = vmatprep.subr.bf16.mxu0 0
    %105 = vmatpush1.bf16.msra.mxu0 0
    %106 = vmatprep.mubr.bf16.mxu0 0
    %107 = vmatmul.mubr.bf16.gmra.mrb[0].mxu0 %v72
    %v108 = vpop.f32.mrb[0].mxu0
    %v109 = vadd.f32 %v56, %v108
    %v110 = vpop.f32.mrb[0].mxu0
    %v111 = vpop.f32.mrb[0].mxu0
    %v112 = vadd.f32 %v56, %v111
    %v113 = vpop.f32.mrb[0].mxu0
    %114 = vdwg.mxu0
    %v115 = vadd.f32 %v44, %v109
    %v116 = vadd.f32 %v45, %v112
    %117 = vst.msk [vmem:[#allocation7] sm:$0xff] %vm70, %v115
    %118 = vst.msk [vmem:[#allocation7 + $0x8] sm:$0xff] %vm70, %v116
    // Predicated region
    $region22: #{tpu_custom_call.1} parent=1 // pred_check
      _
    $region23: #{tpu_custom_call.1} parent=1 // pred_check_branch
      %120 = sbr.rel (0) target = $region25
    $region24: #{tpu_custom_call.1} parent=1 // pred_region
      %s122 = ssub.s32 256, 256
      %123 = vsyncadd [#allocation4], %s122
      %s124 = sshll.u32 [#allocation7], 4
      %s125 = int_to_ptr.vmem [resolvable:$true] %s124
      %130 = dma.vmem_to_hbm [thread:$0]  %s125, 256, %s3, [#allocation4], 128, 128, 8
    $region25: #{tpu_custom_call.1} parent=1 // pred_fallthru
      _
    // Predicated region
    $region26: #{tpu_custom_call.1} parent=1 // pred_check
      _
    $region27: #{tpu_custom_call.1} parent=1 // pred_check_branch
      %132 = sbr.rel (0) target = $region29
    $region28: #{tpu_custom_call.1} parent=1 // pred_region
      %133 = dma.done [#allocation4], 256
    $region29: #{tpu_custom_call.1} parent=1 // pred_fallthru
      _
    %134 = vsyncpa [#allocation3], 1
    %135 = vsyncpa [#allocation6], 1
    %136 = vsyncpa [#allocation4], 1

// kernel: tpu_custom_call.1
$region0: #{tpu_custom_call.1}
  #allocation0 [shape = 'u32[]', space=smem, size = 0x4, offset = 0x4, fixed_abs, tag = 'smem constant byte address 0x4 - core index']
  #allocation1 [shape = 'u32[144,128]{1,0:T(1,128)}', space=vmem, size = 0x12000, scoped, tag = 'internal scratch']
  %s0 = inlined_call_operand.hbm [shape: f32[16,32], index: 0, kind: input, shape index: {}]
  %s1 = inlined_call_operand.hbm [shape: bf16[32,32], index: 1, kind: input, shape index: {}]
  %s2 = inlined_call_operand.vmem [shape: f32[1,32], index: 2, kind: input, shape index: {}]
  %s3 = inlined_call_operand.hbm [shape: f32[16,32], index: 3, kind: output, shape index: {}]
  %s4 = sld [smem:[#allocation0]]
  $region30: #{tpu_custom_call.1} parent=0
    _
  %s6 = ssub.s32 1, %s4
  %s7 = scalar_select 0, %s6, %s4
  $region1: #{tpu_custom_call.1} parent=0
    #allocation2 [shape = 'u8[8192]{0}', space=vmem, size = 0x2000, scoped, tag = 'input window, operand 0, single buffered']
    #allocation3 [shape = 's32[1]{0}', space=sflag, size = 0x4, scoped, tag = 'scoped memory for tpu_custom_call.1']
    #allocation4 [shape = 's32[1]{0}', space=sflag, size = 0x4, scoped, tag = 'scoped memory for tpu_custom_call.1']
    #allocation5 [shape = 'u8[8192]{0}', space=vmem, size = 0x2000, scoped, tag = 'input window, operand 1, single buffered']
    #allocation6 [shape = 's32[1]{0}', space=sflag, size = 0x4, scoped, tag = 'scoped memory for tpu_custom_call.1']
    #allocation7 [shape = 'u8[8192]{0}', space=vmem, size = 0x2000, scoped, tag = 'output window, operand 0, single buffered']
    %8 = vsyncpa [#allocation3], 0
    %9 = vsyncpa [#allocation6], 0
    %10 = vsyncpa [#allocation4], 0
    // Predicated region
    $region2: #{tpu_custom_call.1} parent=1 // pred_check
      _
    $region3: #{tpu_custom_call.1} parent=1 // pred_check_branch
      %12 = sbr.rel (0) target = $region5
    $region4: #{tpu_custom_call.1} parent=1 // pred_region
      %s14 = ssub.s32 256, 256
      %15 = vsyncadd [#allocation3], %s14
      %s16 = sshll.u32 [#allocation2], 4
      %s17 = int_to_ptr.vmem [resolvable:$true] %s16
      %22 = dma.hbm_to_vmem [thread:$0]  %s0, 256, %s17, [#allocation3], 128, 128, 8
    $region5: #{tpu_custom_call.1} parent=1 // pred_fallthru
      _
    // Predicated region
    $region6: #{tpu_custom_call.1} parent=1 // pred_check
      _
    $region7: #{tpu_custom_call.1} parent=1 // pred_check_branch
      %24 = sbr.rel (0) target = $region9
    $region8: #{tpu_custom_call.1} parent=1 // pred_region
      %s26 = ssub.s32 256, 256
      %27 = vsyncadd [#allocation6], %s26
      %s28 = sshll.u32 [#allocation5], 4
      %s29 = int_to_ptr.vmem [resolvable:$true] %s28
      %34 = dma.hbm_to_vmem [thread:$0]  %s1, 256, %s29, [#allocation6], 64, 64, 4
    $region9: #{tpu_custom_call.1} parent=1 // pred_fallthru
      _
    // Predicated region
    $region10: #{tpu_custom_call.1} parent=1 // pred_check
      _
    $region11: #{tpu_custom_call.1} parent=1 // pred_check_branch
      %36 = sbr.rel (0) target = $region13
    $region12: #{tpu_custom_call.1} parent=1 // pred_region
      _
    $region13: #{tpu_custom_call.1} parent=1 // pred_fallthru
      _
    // Predicated region
    $region14: #{tpu_custom_call.1} parent=1 // pred_check
      _
    $region15: #{tpu_custom_call.1} parent=1 // pred_check_branch
      %38 = sbr.rel (0) target = $region17
    $region16: #{tpu_custom_call.1} parent=1 // pred_region
      %39 = dma.done [#allocation3], 256
    $region17: #{tpu_custom_call.1} parent=1 // pred_fallthru
      _
    // Predicated region
    $region18: #{tpu_custom_call.1} parent=1 // pred_check
      _
    $region19: #{tpu_custom_call.1} parent=1 // pred_check_branch
      %41 = sbr.rel (0) target = $region21
    $region20: #{tpu_custom_call.1} parent=1 // pred_region
      %42 = dma.done [#allocation6], 256
    $region21: #{tpu_custom_call.1} parent=1 // pred_fallthru
      _
    %v44 = vld [vmem:[#allocation2] sm:$0xff]
    %v45 = vld [vmem:[#allocation2 + $0x8] sm:$0xff]
    %v46 = vpack.c.bf16 %v45, %v44
    %v47 = vld [vmem:[#allocation5] sm:$0xf]
    %v48 = vld [vmem:[#allocation5 + $0x4] sm:$0xf]
    %v49 = vld [vmem:[#allocation5 + $0x8] sm:$0xf]
    %v50 = vld [vmem:[#allocation5 + $0xc] sm:$0xf]
    %v51 = vld [vmem:[%s2] sm:$0x1]
    %v53 = vlaneseq
    %v54 = vshrl.u32 %v53, 7
    %v55 = vsub.s32 0, %v54
    %v56 = vrot.slane %v51, %v55
    %v62 = vunpack.c.l.b16 %v47
    %v63 = vunpack.c.l.b16 %v48
    %v64 = vunpack.c.l.b16 %v49
    %v65 = vunpack.c.l.b16 %v50
    %v66 = vpack.c.b16 %v63, %v62
    %v67 = vpack.c.b16 %v65, %v64
    %vm70 = vcmask 261120
    %v72 = vsel %vm70, %v46, 0
    %74 = vmatprep.subr.bf16.mxu0 0
    %75 = vmatpush1.bf16.msra.mxu0 %v66
    %76 = vmatprep.subr.bf16.mxu0 0
    %77 = vmatpush1.bf16.msra.mxu0 %v67
    %78 = vmatprep.subr.bf16.mxu0 0
    %79 = vmatpush1.bf16.msra.mxu0 0
    %80 = vmatprep.subr.bf16.mxu0 0
    %81 = vmatpush1.bf16.msra.mxu0 0
    %82 = vmatprep.subr.bf16.mxu0 0
    %83 = vmatpush1.bf16.msra.mxu0 0
    %84 = vmatprep.subr.bf16.mxu0 0
    %85 = vmatpush1.bf16.msra.mxu0 0
    %86 = vmatprep.subr.bf16.mxu0 0
    %87 = vmatpush1.bf16.msra.mxu0 0
    %88 = vmatprep.subr.bf16.mxu0 0
    %89 = vmatpush1.bf16.msra.mxu0 0
    %90 = vmatprep.subr.bf16.mxu0 0
    %91 = vmatpush1.bf16.msra.mxu0 0
    %92 = vmatprep.subr.bf16.mxu0 0
    %93 = vmatpush1.bf16.msra.mxu0 0
    %94 = vmatprep.subr.bf16.mxu0 0
    %95 = vmatpush1.bf16.msra.mxu0 0
    %96 = vmatprep.subr.bf16.mxu0 0
    %97 = vmatpush1.bf16.msra.mxu0 0
    %98 = vmatprep.subr.bf16.mxu0 0
    %99 = vmatpush1.bf16.msra.mxu0 0
    %100 = vmatprep.subr.bf16.mxu0 0
    %101 = vmatpush1.bf16.msra.mxu0 0
    %102 = vmatprep.subr.bf16.mxu0 0
    %103 = vmatpush1.bf16.msra.mxu0 0
    %104 = vmatprep.subr.bf16.mxu0 0
    %105 = vmatpush1.bf16.msra.mxu0 0
    %106 = vmatprep.mubr.bf16.mxu0 0
    %107 = vmatmul.mubr.bf16.gmra.mrb[0].mxu0 %v72
    %v108 = vpop.f32.mrb[0].mxu0
    %v109 = vadd.f32 %v56, %v108
    %v110 = vpop.f32.mrb[0].mxu0
    %v111 = vpop.f32.mrb[0].mxu0
    %v112 = vadd.f32 %v56, %v111
    %v113 = vpop.f32.mrb[0].mxu0
    %114 = vdwg.mxu0
    %v115 = vadd.f32 %v44, %v109
    %v116 = vadd.f32 %v45, %v112
    %117 = vst.msk [vmem:[#allocation7] sm:$0xff] %vm70, %v115
    %118 = vst.msk [vmem:[#allocation7 + $0x8] sm:$0xff] %vm70, %v116
    // Predicated region
    $region22: #{tpu_custom_call.1} parent=1 // pred_check
      _
    $region23: #{tpu_custom_call.1} parent=1 // pred_check_branch
      %120 = sbr.rel (0) target = $region25
    $region24: #{tpu_custom_call.1} parent=1 // pred_region
      %s122 = ssub.s32 256, 256
      %123 = vsyncadd [#allocation4], %s122
      %s124 = sshll.u32 [#allocation7], 4
      %s125 = int_to_ptr.vmem [resolvable:$true] %s124
      %130 = dma.vmem_to_hbm [thread:$0]  %s125, 256, %s3, [#allocation4], 128, 128, 8
    $region25: #{tpu_custom_call.1} parent=1 // pred_fallthru
      _
    // Predicated region
    $region26: #{tpu_custom_call.1} parent=1 // pred_check
      _
    $region27: #{tpu_custom_call.1} parent=1 // pred_check_branch
      %132 = sbr.rel (0) target = $region29
    $region28: #{tpu_custom_call.1} parent=1 // pred_region
      %133 = dma.done [#allocation4], 256
    $region29: #{tpu_custom_call.1} parent=1 // pred_fallthru
      _
    %134 = vsyncpa [#allocation3], 1
    %135 = vsyncpa [#allocation6], 1
    %136 = vsyncpa [#allocation4], 1

</llo_original>
